<compile_context>
chip_gen: v5e
topology: v5e:2x2
jax: 0.10.0
libtpu: 0.0.40
codegen_flags: <defaults>
</compile_context>

<pallas_src>
import functools

import jax
import jax.numpy as jnp
from jax.experimental import pallas as pl
from jax.experimental.pallas import tpu as pltpu

HIDDEN = 256
LANE = 128
NEG_SLOPE = 0.1

# Keep scoped-VMEM requests comfortably under v7x's 64 MiB physical per-TC VMEM.
VMEM_BUDGET = 40 * 1024 * 1024


def _leaky_relu(v, slope=NEG_SLOPE):
    return jnp.where(v > 0, v, slope * v)


def _round_up(x, m):
    return ((x + m - 1) // m) * m


def decoder_kernel(x_ref,
                   w0_ref, b0_ref,
                   w1_ref, b1_ref,
                   w2_ref, b2_ref,
                   w3_ref, b3_ref,
                   w4_ref, b4_ref,
                   o_ref):
    """Fused 5-layer MLP: bf16 MXU matmuls with f32 accumulation, f32 activations."""
    # Cast the f32 input tile to bf16 on the VPU (which has slack) rather than
    # paying a separate wrapper-side cast pass over HBM.
    x = x_ref[...].astype(jnp.bfloat16)

    h = jnp.dot(x, w0_ref[...], preferred_element_type=jnp.float32) + b0_ref[...]
    h = _leaky_relu(h)

    h = jnp.dot(h.astype(jnp.bfloat16), w1_ref[...],
                preferred_element_type=jnp.float32) + b1_ref[...]
    h = _leaky_relu(h)

    h = jnp.dot(h.astype(jnp.bfloat16), w2_ref[...],
                preferred_element_type=jnp.float32) + b2_ref[...]
    h = _leaky_relu(h)

    h = jnp.dot(h.astype(jnp.bfloat16), w3_ref[...],
                preferred_element_type=jnp.float32) + b3_ref[...]
    h = _leaky_relu(h)

    # Final layer at its true (narrow) width: no dead-column bias/tanh work and
    # the HBM writeback is exactly out_size f32 per row (no padding, no slice).
    y = jnp.dot(h.astype(jnp.bfloat16), w4_ref[...],
                preferred_element_type=jnp.float32) + b4_ref[...]
    o_ref[...] = jnp.tanh(y).astype(o_ref.dtype)


def _vmem_footprint(block_b, emb, hidden, out_size, param_bytes):
    x_tile = block_b * emb * 4 * 2          # f32 input tile, double-buffered
    out_tile = block_b * out_size * 4 * 2   # f32 output tile, double-buffered
    acts = block_b * hidden * (2 * 4 + 2)   # ~2 live f32 copies of h + a bf16 cast
    return x_tile + out_tile + acts + param_bytes


def _pick_block_b(B, block_b, emb, hidden, out_size, param_bytes):
    if B > block_b:
        n_tiles = -(-B // block_b)
    elif B >= 512:
        # >=2 grid steps so a v7x megacore can shard the "parallel" axis while
        # each tile still keeps MXU M >= 256.  For smaller batches a single
        # tile avoids paying the per-step overhead twice on single-TC v5e/v6e.
        n_tiles = 2
    else:
        n_tiles = 1
    tile = -(-B // n_tiles)
    tile = _round_up(tile, 128 if tile >= 128 else 16)
    # Shrink (rarely needed) if activations would exceed the VMEM budget.
    while tile > 256 and _vmem_footprint(tile, emb, hidden, out_size,
                                         param_bytes) > VMEM_BUDGET:
        tile = _round_up(tile // 2, 128)
    return tile


@functools.partial(jax.jit, static_argnames=("block_b",))
def decoder_forward(x, params, block_b=2048):
    """x: (B, emb_size) f32. params: output of prepare_params (bf16 W, f32 (1,n) b)."""
    B, emb_size = x.shape
    hidden = params["w1"].shape[0]
    out_size = params["w4"].shape[1]

    ws = [params[f"w{i}"] for i in range(5)]
    bs = [params[f"b{i}"] for i in range(5)]
    param_bytes = (sum(int(w.size) * w.dtype.itemsize for w in ws)
                   + sum(int(b.size) * b.dtype.itemsize for b in bs))

    block_b_eff = _pick_block_b(B, block_b, emb_size, hidden, out_size, param_bytes)
    B_pad = _round_up(B, block_b_eff)
    if B_pad != B:
        x = jnp.pad(x, ((0, B_pad - B), (0, 0)))

    grid = (B_pad // block_b_eff,)

    def resident(shape):
        # Constant block index every grid step -> Pallas keeps the block
        # VMEM-resident across the whole grid (weights DMA'd once, not per step).
        return pl.BlockSpec(shape, lambda i: (0,) * len(shape))

    in_specs = [pl.BlockSpec((block_b_eff, emb_size), lambda i: (i, 0))]
    for w, b in zip(ws, bs):
        in_specs.append(resident(w.shape))
        in_specs.append(resident(b.shape))
    out_specs = pl.BlockSpec((block_b_eff, out_size), lambda i: (i, 0))

    flops = 2 * B_pad * (emb_size * hidden + 3 * hidden * hidden + hidden * out_size)
    transcendentals = B_pad * out_size  # tanh
    bytes_accessed = B_pad * emb_size * 4 + param_bytes + B_pad * out_size * 4

    compiler_kwargs = dict(dimension_semantics=("parallel",))
    footprint = _vmem_footprint(block_b_eff, emb_size, hidden, out_size, param_bytes)
    if footprint > 12 * 1024 * 1024:
        # Raise the scoped-VMEM limit only when the tile needs it; cap well
        # below v7x's 64 MiB physical per-core VMEM.
        compiler_kwargs["vmem_limit_bytes"] = int(
            min(48 * 1024 * 1024, max(32 * 1024 * 1024, footprint + 4 * 1024 * 1024)))

    args = [x]
    for w, b in zip(ws, bs):
        args.append(w)
        args.append(b)

    out = pl.pallas_call(
        decoder_kernel,
        out_shape=jax.ShapeDtypeStruct((B_pad, out_size), jnp.float32),
        grid_spec=pltpu.PrefetchScalarGridSpec(
            num_scalar_prefetch=0,
            grid=grid,
            in_specs=in_specs,
            out_specs=out_specs,
        ),
        compiler_params=pltpu.CompilerParams(**compiler_kwargs),
        cost_estimate=pl.CostEstimate(
            flops=flops,
            transcendentals=transcendentals,
            bytes_accessed=bytes_accessed),
    )(*args)

    if B_pad != B:
        out = out[:B]
    return out


def prepare_params(params):
    """One-time cast of parameters to the kernel dtypes (bf16 W, f32 (1, n) b).

    Done OUTSIDE the per-call jit so the casts are not re-run every forward.
    """
    prepped = {}
    for i in range(5):
        prepped[f"w{i}"] = jnp.asarray(params[f"w{i}"], jnp.bfloat16)
        prepped[f"b{i}"] = jnp.asarray(params[f"b{i}"], jnp.float32).reshape(1, -1)
    return prepped


def init_params(key, emb_size, out_size, hidden=HIDDEN):
    """Deterministic init mimicking PyTorch Linear's U(-1/sqrt(fan_in), ...).

    Weights stored transposed: (in_features, out_features).
    Biases stored as (1, out_features) for TPU-friendly 2D layouts.
    """
    dims = [(emb_size, hidden), (hidden, hidden), (hidden, hidden),
            (hidden, hidden), (hidden, out_size)]
    params = {}
    for idx, (fan_in, fan_out) in enumerate(dims):
        key, kw, kb = jax.random.split(key, 3)
        bound = 1.0 / jnp.sqrt(fan_in)
        params[f"w{idx}"] = jax.random.uniform(
            kw, (fan_in, fan_out), jnp.float32, -bound, bound)
        params[f"b{idx}"] = jax.random.uniform(
            kb, (1, fan_out), jnp.float32, -bound, bound)
    return params


def decoder_ref(x, params, matmul_dtype=jnp.float32):
    """Pure-JAX reference. matmul_dtype=bfloat16 matches kernel precision."""
    h = x
    for idx in range(4):
        w = params[f"w{idx}"].astype(matmul_dtype)
        h = _leaky_relu(jnp.dot(h.astype(matmul_dtype), w,
                                preferred_element_type=jnp.float32)
                        + params[f"b{idx}"])
    w4 = params["w4"].astype(matmul_dtype)
    return jnp.tanh(jnp.dot(h.astype(matmul_dtype), w4,
                            preferred_element_type=jnp.float32) + params["b4"])


if __name__ == "__main__":
    emb_size = 32
    out_size = 16
    batch = 8

    key = jax.random.PRNGKey(0)
    key, kx = jax.random.split(key)
    x = jax.random.normal(kx, (batch, emb_size), jnp.float32)
    params = init_params(key, emb_size, out_size)

    prepared = prepare_params(params)   # cast once, outside the per-call jit

    out = decoder_forward(x, prepared)
    out = jax.block_until_ready(out)
    assert out.shape == (batch, out_size)

    # Matched-precision reference (bf16 matmuls, f32 accumulate): tight check.
    ref_bf16 = decoder_ref(x, params, matmul_dtype=jnp.bfloat16)
    assert jnp.allclose(out, ref_bf16, atol=1e-3, rtol=1e-3), "mismatch vs bf16 reference"

    # Full-f32 reference (PyTorch semantics): loose check for bf16 matmul drift.
    ref_f32 = decoder_ref(x, params, matmul_dtype=jnp.float32)
    assert jnp.allclose(out, ref_f32, atol=5e-2, rtol=5e-2), "mismatch vs f32 reference"

    print("KERNEL_OK")
</pallas_src>

<mosaic_0001>
module attributes {stable_mosaic.version = 11 : i64} {
  func.func @decoder_kernel(%arg0: i32, %arg1: memref<16x32xf32, #tpu.memory_space<vmem>>, %arg2: memref<32x256xbf16, #tpu.memory_space<vmem>>, %arg3: memref<1x256xf32, #tpu.memory_space<vmem>>, %arg4: memref<256x256xbf16, #tpu.memory_space<vmem>>, %arg5: memref<1x256xf32, #tpu.memory_space<vmem>>, %arg6: memref<256x256xbf16, #tpu.memory_space<vmem>>, %arg7: memref<1x256xf32, #tpu.memory_space<vmem>>, %arg8: memref<256x256xbf16, #tpu.memory_space<vmem>>, %arg9: memref<1x256xf32, #tpu.memory_space<vmem>>, %arg10: memref<256x16xbf16, #tpu.memory_space<vmem>>, %arg11: memref<1x16xf32, #tpu.memory_space<vmem>>, %arg12: memref<16x16xf32, #tpu.memory_space<vmem>>) attributes {dimension_semantics = [#tpu.dimension_semantics<parallel>], iteration_bounds = array<i64: 1>, scalar_prefetch = 0 : i64, scratch_operands = 0 : i64, tpu.core_type = #tpu.core_type<tc>, window_params = [{transform_indices = @transform_0, window_bounds = array<i64: 16, 32>}, {pipeline_mode = #tpu.pipeline_mode<synchronous>, transform_indices = @transform_1, window_bounds = array<i64: 32, 256>}, {pipeline_mode = #tpu.pipeline_mode<synchronous>, transform_indices = @transform_2, window_bounds = array<i64: 1, 256>}, {pipeline_mode = #tpu.pipeline_mode<synchronous>, transform_indices = @transform_3, window_bounds = array<i64: 256, 256>}, {pipeline_mode = #tpu.pipeline_mode<synchronous>, transform_indices = @transform_4, window_bounds = array<i64: 1, 256>}, {pipeline_mode = #tpu.pipeline_mode<synchronous>, transform_indices = @transform_5, window_bounds = array<i64: 256, 256>}, {pipeline_mode = #tpu.pipeline_mode<synchronous>, transform_indices = @transform_6, window_bounds = array<i64: 1, 256>}, {pipeline_mode = #tpu.pipeline_mode<synchronous>, transform_indices = @transform_7, window_bounds = array<i64: 256, 256>}, {pipeline_mode = #tpu.pipeline_mode<synchronous>, transform_indices = @transform_8, window_bounds = array<i64: 1, 256>}, {pipeline_mode = #tpu.pipeline_mode<synchronous>, transform_indices = @transform_9, window_bounds = array<i64: 256, 16>}, {pipeline_mode = #tpu.pipeline_mode<synchronous>, transform_indices = @transform_10, window_bounds = array<i64: 1, 16>}, {transform_indices = @transform_11, window_bounds = array<i64: 16, 16>}]} {
    %c0 = arith.constant 0 : index
    %c0_0 = arith.constant 0 : index
    %0 = vector.load %arg1[%c0, %c0_0] : memref<16x32xf32, #tpu.memory_space<vmem>>, vector<16x32xf32>
    %1 = arith.truncf %0 : vector<16x32xf32> to vector<16x32xbf16>
    %c0_1 = arith.constant 0 : index
    %c0_2 = arith.constant 0 : index
    %2 = vector.load %arg2[%c0_1, %c0_2] : memref<32x256xbf16, #tpu.memory_space<vmem>>, vector<32x256xbf16>
    %cst = arith.constant dense<0.000000e+00> : vector<16x256xf32>
    %3 = tpu.matmul %1, %2, %cst {dimension_numbers = #tpu.dot_dimension_numbers<[1], [0], [0], [1], [0, 0, 1, 1], [], []>} : vector<16x32xbf16>, vector<32x256xbf16>, vector<16x256xf32> -> vector<16x256xf32>
    %c0_3 = arith.constant 0 : index
    %c0_4 = arith.constant 0 : index
    %4 = vector.load %arg3[%c0_3, %c0_4] : memref<1x256xf32, #tpu.memory_space<vmem>>, vector<1x256xf32>
    %5 = vector.broadcast %4 : vector<1x256xf32> to vector<16x256xf32>
    %6 = arith.addf %3, %5 : vector<16x256xf32>
    %cst_5 = arith.constant 0.000000e+00 : f32
    %7 = vector.broadcast %cst_5 : f32 to vector<16x256xf32>
    %8 = arith.cmpf ogt, %6, %7 : vector<16x256xf32>
    %cst_6 = arith.constant 1.000000e-01 : f32
    %9 = vector.broadcast %cst_6 : f32 to vector<16x256xf32>
    %10 = arith.mulf %9, %6 : vector<16x256xf32>
    %11 = arith.select %8, %6, %10 : vector<16x256xi1>, vector<16x256xf32>
    %12 = arith.truncf %11 : vector<16x256xf32> to vector<16x256xbf16>
    %c0_7 = arith.constant 0 : index
    %c0_8 = arith.constant 0 : index
    %13 = vector.load %arg4[%c0_7, %c0_8] : memref<256x256xbf16, #tpu.memory_space<vmem>>, vector<256x256xbf16>
    %cst_9 = arith.constant dense<0.000000e+00> : vector<16x256xf32>
    %14 = tpu.matmul %12, %13, %cst_9 {dimension_numbers = #tpu.dot_dimension_numbers<[1], [0], [0], [1], [0, 0, 1, 1], [], []>} : vector<16x256xbf16>, vector<256x256xbf16>, vector<16x256xf32> -> vector<16x256xf32>
    %c0_10 = arith.constant 0 : index
    %c0_11 = arith.constant 0 : index
    %15 = vector.load %arg5[%c0_10, %c0_11] : memref<1x256xf32, #tpu.memory_space<vmem>>, vector<1x256xf32>
    %16 = vector.broadcast %15 : vector<1x256xf32> to vector<16x256xf32>
    %17 = arith.addf %14, %16 : vector<16x256xf32>
    %cst_12 = arith.constant 0.000000e+00 : f32
    %18 = vector.broadcast %cst_12 : f32 to vector<16x256xf32>
    %19 = arith.cmpf ogt, %17, %18 : vector<16x256xf32>
    %cst_13 = arith.constant 1.000000e-01 : f32
    %20 = vector.broadcast %cst_13 : f32 to vector<16x256xf32>
    %21 = arith.mulf %20, %17 : vector<16x256xf32>
    %22 = arith.select %19, %17, %21 : vector<16x256xi1>, vector<16x256xf32>
    %23 = arith.truncf %22 : vector<16x256xf32> to vector<16x256xbf16>
    %c0_14 = arith.constant 0 : index
    %c0_15 = arith.constant 0 : index
    %24 = vector.load %arg6[%c0_14, %c0_15] : memref<256x256xbf16, #tpu.memory_space<vmem>>, vector<256x256xbf16>
    %cst_16 = arith.constant dense<0.000000e+00> : vector<16x256xf32>
    %25 = tpu.matmul %23, %24, %cst_16 {dimension_numbers = #tpu.dot_dimension_numbers<[1], [0], [0], [1], [0, 0, 1, 1], [], []>} : vector<16x256xbf16>, vector<256x256xbf16>, vector<16x256xf32> -> vector<16x256xf32>
    %c0_17 = arith.constant 0 : index
    %c0_18 = arith.constant 0 : index
    %26 = vector.load %arg7[%c0_17, %c0_18] : memref<1x256xf32, #tpu.memory_space<vmem>>, vector<1x256xf32>
    %27 = vector.broadcast %26 : vector<1x256xf32> to vector<16x256xf32>
    %28 = arith.addf %25, %27 : vector<16x256xf32>
    %cst_19 = arith.constant 0.000000e+00 : f32
    %29 = vector.broadcast %cst_19 : f32 to vector<16x256xf32>
    %30 = arith.cmpf ogt, %28, %29 : vector<16x256xf32>
    %cst_20 = arith.constant 1.000000e-01 : f32
    %31 = vector.broadcast %cst_20 : f32 to vector<16x256xf32>
    %32 = arith.mulf %31, %28 : vector<16x256xf32>
    %33 = arith.select %30, %28, %32 : vector<16x256xi1>, vector<16x256xf32>
    %34 = arith.truncf %33 : vector<16x256xf32> to vector<16x256xbf16>
    %c0_21 = arith.constant 0 : index
    %c0_22 = arith.constant 0 : index
    %35 = vector.load %arg8[%c0_21, %c0_22] : memref<256x256xbf16, #tpu.memory_space<vmem>>, vector<256x256xbf16>
    %cst_23 = arith.constant dense<0.000000e+00> : vector<16x256xf32>
    %36 = tpu.matmul %34, %35, %cst_23 {dimension_numbers = #tpu.dot_dimension_numbers<[1], [0], [0], [1], [0, 0, 1, 1], [], []>} : vector<16x256xbf16>, vector<256x256xbf16>, vector<16x256xf32> -> vector<16x256xf32>
    %c0_24 = arith.constant 0 : index
    %c0_25 = arith.constant 0 : index
    %37 = vector.load %arg9[%c0_24, %c0_25] : memref<1x256xf32, #tpu.memory_space<vmem>>, vector<1x256xf32>
    %38 = vector.broadcast %37 : vector<1x256xf32> to vector<16x256xf32>
    %39 = arith.addf %36, %38 : vector<16x256xf32>
    %cst_26 = arith.constant 0.000000e+00 : f32
    %40 = vector.broadcast %cst_26 : f32 to vector<16x256xf32>
    %41 = arith.cmpf ogt, %39, %40 : vector<16x256xf32>
    %cst_27 = arith.constant 1.000000e-01 : f32
    %42 = vector.broadcast %cst_27 : f32 to vector<16x256xf32>
    %43 = arith.mulf %42, %39 : vector<16x256xf32>
    %44 = arith.select %41, %39, %43 : vector<16x256xi1>, vector<16x256xf32>
    %45 = arith.truncf %44 : vector<16x256xf32> to vector<16x256xbf16>
    %c0_28 = arith.constant 0 : index
    %c0_29 = arith.constant 0 : index
    %46 = vector.load %arg10[%c0_28, %c0_29] : memref<256x16xbf16, #tpu.memory_space<vmem>>, vector<256x16xbf16>
    %cst_30 = arith.constant dense<0.000000e+00> : vector<16x16xf32>
    %47 = tpu.matmul %45, %46, %cst_30 {dimension_numbers = #tpu.dot_dimension_numbers<[1], [0], [0], [1], [0, 0, 1, 1], [], []>} : vector<16x256xbf16>, vector<256x16xbf16>, vector<16x16xf32> -> vector<16x16xf32>
    %c0_31 = arith.constant 0 : index
    %c0_32 = arith.constant 0 : index
    %48 = vector.load %arg11[%c0_31, %c0_32] : memref<1x16xf32, #tpu.memory_space<vmem>>, vector<1x16xf32>
    %49 = vector.broadcast %48 : vector<1x16xf32> to vector<16x16xf32>
    %50 = arith.addf %47, %49 : vector<16x16xf32>
    %51 = math.tanh %50 : vector<16x16xf32>
    %c0_33 = arith.constant 0 : index
    %c0_34 = arith.constant 0 : index
    %52 = vector.load %arg12[%c0_33, %c0_34] : memref<16x16xf32, #tpu.memory_space<vmem>>, vector<16x16xf32>
    tpu.vector_store %arg12[%c0_33, %c0_34], %51 {strides = array<i32>} : memref<16x16xf32, #tpu.memory_space<vmem>>, vector<16x16xf32>,
    return
  }
  func.func @transform_0(%arg0: i32) -> (i32, i32) {
    %c0_i32 = arith.constant 0 : i32
    %c0_i32_0 = arith.constant 0 : i32
    return %arg0, %c0_i32 : i32, i32
  }
  func.func @transform_1(%arg0: i32) -> (i32, i32) {
    %c0_i32 = arith.constant 0 : i32
    %c0_i32_0 = arith.constant 0 : i32
    %c0_i32_1 = arith.constant 0 : i32
    return %c0_i32, %c0_i32_0 : i32, i32
  }
  func.func @transform_2(%arg0: i32) -> (i32, i32) {
    %c0_i32 = arith.constant 0 : i32
    %c0_i32_0 = arith.constant 0 : i32
    %c0_i32_1 = arith.constant 0 : i32
    return %c0_i32, %c0_i32_0 : i32, i32
  }
  func.func @transform_3(%arg0: i32) -> (i32, i32) {
    %c0_i32 = arith.constant 0 : i32
    %c0_i32_0 = arith.constant 0 : i32
    %c0_i32_1 = arith.constant 0 : i32
    return %c0_i32, %c0_i32_0 : i32, i32
  }
  func.func @transform_4(%arg0: i32) -> (i32, i32) {
    %c0_i32 = arith.constant 0 : i32
    %c0_i32_0 = arith.constant 0 : i32
    %c0_i32_1 = arith.constant 0 : i32
    return %c0_i32, %c0_i32_0 : i32, i32
  }
  func.func @transform_5(%arg0: i32) -> (i32, i32) {
    %c0_i32 = arith.constant 0 : i32
    %c0_i32_0 = arith.constant 0 : i32
    %c0_i32_1 = arith.constant 0 : i32
    return %c0_i32, %c0_i32_0 : i32, i32
  }
  func.func @transform_6(%arg0: i32) -> (i32, i32) {
    %c0_i32 = arith.constant 0 : i32
    %c0_i32_0 = arith.constant 0 : i32
    %c0_i32_1 = arith.constant 0 : i32
    return %c0_i32, %c0_i32_0 : i32, i32
  }
  func.func @transform_7(%arg0: i32) -> (i32, i32) {
    %c0_i32 = arith.constant 0 : i32
    %c0_i32_0 = arith.constant 0 : i32
    %c0_i32_1 = arith.constant 0 : i32
    return %c0_i32, %c0_i32_0 : i32, i32
  }
  func.func @transform_8(%arg0: i32) -> (i32, i32) {
    %c0_i32 = arith.constant 0 : i32
    %c0_i32_0 = arith.constant 0 : i32
    %c0_i32_1 = arith.constant 0 : i32
    return %c0_i32, %c0_i32_0 : i32, i32
  }
  func.func @transform_9(%arg0: i32) -> (i32, i32) {
    %c0_i32 = arith.constant 0 : i32
    %c0_i32_0 = arith.constant 0 : i32
    %c0_i32_1 = arith.constant 0 : i32
    return %c0_i32, %c0_i32_0 : i32, i32
  }
  func.func @transform_10(%arg0: i32) -> (i32, i32) {
    %c0_i32 = arith.constant 0 : i32
    %c0_i32_0 = arith.constant 0 : i32
    %c0_i32_1 = arith.constant 0 : i32
    return %c0_i32, %c0_i32_0 : i32, i32
  }
  func.func @transform_11(%arg0: i32) -> (i32, i32) {
    %c0_i32 = arith.constant 0 : i32
    %c0_i32_0 = arith.constant 0 : i32
    return %arg0, %c0_i32 : i32, i32
  }
}

</mosaic_0001>

<llo_original>
// kernel: decoder_forward.1
$region0: #{decoder_forward.1}
  #allocation0 [shape = 'u32[]', space=smem, size = 0x4, offset = 0x4, fixed_abs, tag = 'smem constant byte address 0x4 - core index']
  #allocation1 [shape = 'u32[72,128]{1,0:T(1,128)}', space=vmem, size = 0x9000, scoped, tag = 'internal scratch']
  %s0 = inlined_call_operand.vmem [shape: f32[16,32], index: 0, kind: input, shape index: {}]
  %s1 = inlined_call_operand.vmem [shape: bf16[32,256], index: 1, kind: input, shape index: {}]
  %s2 = inlined_call_operand.vmem [shape: f32[1,256], index: 2, kind: input, shape index: {}]
  %s3 = inlined_call_operand.hbm [shape: bf16[256,256], index: 3, kind: input, shape index: {}]
  %s4 = inlined_call_operand.vmem [shape: f32[1,256], index: 4, kind: input, shape index: {}]
  %s5 = inlined_call_operand.hbm [shape: bf16[256,256], index: 5, kind: input, shape index: {}]
  %s6 = inlined_call_operand.vmem [shape: f32[1,256], index: 6, kind: input, shape index: {}]
  %s7 = inlined_call_operand.hbm [shape: bf16[256,256], index: 7, kind: input, shape index: {}]
  %s8 = inlined_call_operand.vmem [shape: f32[1,256], index: 8, kind: input, shape index: {}]
  %s9 = inlined_call_operand.vmem [shape: bf16[256,16], index: 9, kind: input, shape index: {}]
  %s10 = inlined_call_operand.vmem [shape: f32[1,16], index: 10, kind: input, shape index: {}]
  %s11 = inlined_call_operand.vmem [shape: f32[16,16], index: 11, kind: output, shape index: {}]
  %s12 = sld [smem:[#allocation0]]
  $region66: #{decoder_forward.1} parent=0
    _
  %s14 = ssub.s32 1, %s12
  %s15 = scalar_select 0, %s14, %s12
  $region1: #{decoder_forward.1} parent=0
    #allocation2 [shape = 'u8[131072]{0}', space=vmem, size = 0x20000, scoped, tag = 'input window, operand 3, single buffered']
    #allocation3 [shape = 's32[1]{0}', space=sflag, size = 0x4, scoped, tag = 'scoped memory for decoder_forward.1']
    #allocation4 [shape = 'u8[131072]{0}', space=vmem, size = 0x20000, scoped, tag = 'input window, operand 5, single buffered']
    #allocation5 [shape = 's32[1]{0}', space=sflag, size = 0x4, scoped, tag = 'scoped memory for decoder_forward.1']
    #allocation6 [shape = 'u8[131072]{0}', space=vmem, size = 0x20000, scoped, tag = 'input window, operand 7, single buffered']
    %16 = vsyncpa [#allocation3], 0
    %17 = vsyncpa [#allocation5], 0
    // Predicated region
    $region2: #{decoder_forward.1} parent=1 // pred_check
      _
    $region3: #{decoder_forward.1} parent=1 // pred_check_branch
      %19 = sbr.rel (0) target = $region5
    $region4: #{decoder_forward.1} parent=1 // pred_region
      _
    $region5: #{decoder_forward.1} parent=1 // pred_fallthru
      _
    // Predicated region
    $region6: #{decoder_forward.1} parent=1 // pred_check
      _
    $region7: #{decoder_forward.1} parent=1 // pred_check_branch
      %21 = sbr.rel (0) target = $region9
    $region8: #{decoder_forward.1} parent=1 // pred_region
      _
    $region9: #{decoder_forward.1} parent=1 // pred_fallthru
      _
    // Predicated region
    $region10: #{decoder_forward.1} parent=1 // pred_check
      _
    $region11: #{decoder_forward.1} parent=1 // pred_check_branch
      %23 = sbr.rel (0) target = $region13
    $region12: #{decoder_forward.1} parent=1 // pred_region
      _
    $region13: #{decoder_forward.1} parent=1 // pred_fallthru
      _
    // Predicated region
    $region14: #{decoder_forward.1} parent=1 // pred_check
      _
    $region15: #{decoder_forward.1} parent=1 // pred_check_branch
      %25 = sbr.rel (0) target = $region17
    $region16: #{decoder_forward.1} parent=1 // pred_region
      %27 = vsyncadd [#allocation3], 0
      %s28 = sshll.u32 %s3, 4
      %s29 = int_to_ptr.hbm [resolvable:$true] %s28
      %s30 = sshll.u32 [#allocation2], 4
      %s31 = int_to_ptr.vmem [resolvable:$true] %s30
      %36 = dma.hbm_to_vmem [thread:$0]  %s29, 4096, %s31, [#allocation3], 128, 128, 8
    $region17: #{decoder_forward.1} parent=1 // pred_fallthru
      _
    // Predicated region
    $region18: #{decoder_forward.1} parent=1 // pred_check
      _
    $region19: #{decoder_forward.1} parent=1 // pred_check_branch
      %38 = sbr.rel (0) target = $region21
    $region20: #{decoder_forward.1} parent=1 // pred_region
      _
    $region21: #{decoder_forward.1} parent=1 // pred_fallthru
      _
    // Predicated region
    $region22: #{decoder_forward.1} parent=1 // pred_check
      _
    $region23: #{decoder_forward.1} parent=1 // pred_check_branch
      %40 = sbr.rel (0) target = $region25
    $region24: #{decoder_forward.1} parent=1 // pred_region
      %42 = vsyncadd [#allocation5], 0
      %s43 = sshll.u32 %s5, 4
      %s44 = int_to_ptr.hbm [resolvable:$true] %s43
      %s45 = sshll.u32 [#allocation4], 4
      %s46 = int_to_ptr.vmem [resolvable:$true] %s45
      %51 = dma.hbm_to_vmem [thread:$0]  %s44, 4096, %s46, [#allocation5], 128, 128, 8
    $region25: #{decoder_forward.1} parent=1 // pred_fallthru
      _
    // Predicated region
    $region26: #{decoder_forward.1} parent=1 // pred_check
      _
    $region27: #{decoder_forward.1} parent=1 // pred_check_branch
      %53 = sbr.rel (0) target = $region29
    $region28: #{decoder_forward.1} parent=1 // pred_region
      _
    $region29: #{decoder_forward.1} parent=1 // pred_fallthru
      _
    // Predicated region
    $region30: #{decoder_forward.1} parent=1 // pred_check
      _
    $region31: #{decoder_forward.1} parent=1 // pred_check_branch
      %55 = sbr.rel (0) target = $region33
    $region32: #{decoder_forward.1} parent=1 // pred_region
      %57 = vsyncadd [#allocation5], 0
      %s58 = sshll.u32 %s7, 4
      %s59 = int_to_ptr.hbm [resolvable:$true] %s58
      %s60 = sshll.u32 [#allocation6], 4
      %s61 = int_to_ptr.vmem [resolvable:$true] %s60
      %66 = dma.hbm_to_vmem [thread:$0]  %s59, 4096, %s61, [#allocation5], 128, 128, 8
    $region33: #{decoder_forward.1} parent=1 // pred_fallthru
      _
    // Predicated region
    $region34: #{decoder_forward.1} parent=1 // pred_check
      _
    $region35: #{decoder_forward.1} parent=1 // pred_check_branch
      %68 = sbr.rel (0) target = $region37
    $region36: #{decoder_forward.1} parent=1 // pred_region
      _
    $region37: #{decoder_forward.1} parent=1 // pred_fallthru
      _
    // Predicated region
    $region38: #{decoder_forward.1} parent=1 // pred_check
      _
    $region39: #{decoder_forward.1} parent=1 // pred_check_branch
      %70 = sbr.rel (0) target = $region41
    $region40: #{decoder_forward.1} parent=1 // pred_region
      _
    $region41: #{decoder_forward.1} parent=1 // pred_fallthru
      _
    // Predicated region
    $region42: #{decoder_forward.1} parent=1 // pred_check
      _
    $region43: #{decoder_forward.1} parent=1 // pred_check_branch
      %72 = sbr.rel (0) target = $region45
    $region44: #{decoder_forward.1} parent=1 // pred_region
      _
    $region45: #{decoder_forward.1} parent=1 // pred_fallthru
      _
    // Predicated region
    $region46: #{decoder_forward.1} parent=1 // pred_check
      _
    $region47: #{decoder_forward.1} parent=1 // pred_check_branch
      %74 = sbr.rel (0) target = $region49
    $region48: #{decoder_forward.1} parent=1 // pred_region
      %76 = dma.done [#allocation3], 4096
    $region49: #{decoder_forward.1} parent=1 // pred_fallthru
      _
    // Predicated region
    $region50: #{decoder_forward.1} parent=1 // pred_check
      _
    $region51: #{decoder_forward.1} parent=1 // pred_check_branch
      %78 = sbr.rel (0) target = $region53
    $region52: #{decoder_forward.1} parent=1 // pred_region
      %80 = dma.done [#allocation5], 4096
    $region53: #{decoder_forward.1} parent=1 // pred_fallthru
      _
    // Predicated region
    $region54: #{decoder_forward.1} parent=1 // pred_check
      _
    $region55: #{decoder_forward.1} parent=1 // pred_check_branch
      %82 = sbr.rel (0) target = $region57
    $region56: #{decoder_forward.1} parent=1 // pred_region
      %84 = dma.done [#allocation5], 4096
    $region57: #{decoder_forward.1} parent=1 // pred_fallthru
      _
    %v86 = vld [vmem:[%s0] sm:$0xff]
    %v87 = vld [vmem:[%s0 + $0x8] sm:$0xff]
    %v88 = vpack.c.bf16 %v87, %v86
    %v89 = vld [vmem:[%s1] sm:$0xff]
    %v90 = vld [vmem:[%s1 + $0x8] sm:$0xff]
    %v91 = vld [vmem:[%s1 + $0x10] sm:$0xff]
    %v92 = vld [vmem:[%s1 + $0x18] sm:$0xff]
    %v93 = vld [vmem:[%s2] sm:$0x3]
    %v95 = vperm.slane %v93, 0
    %v96 = vperm.slane %v93, 1
    %v103 = vunpack.c.l.b16 %v89
    %v104 = vunpack.c.h.b16 %v89
    %v105 = vunpack.c.l.b16 %v90
    %v106 = vunpack.c.h.b16 %v90
    %v107 = vunpack.c.l.b16 %v91
    %v108 = vunpack.c.h.b16 %v91
    %v109 = vunpack.c.l.b16 %v92
    %v110 = vunpack.c.h.b16 %v92
    %v111 = vpack.c.b16 %v105, %v103
    %v112 = vpack.c.b16 %v106, %v104
    %v113 = vpack.c.b16 %v109, %v107
    %v114 = vpack.c.b16 %v110, %v108
    %vm119 = vcmask 261120
    %v121 = vsel %vm119, %v88, 0
    %123 = vmatpush.bf16.msra.mxu0 0
    %124 = vmatpush.bf16.msra.mxu0 0
    %125 = vmatpush.bf16.msra.mxu0 0
    %126 = vmatpush.bf16.msra.mxu0 0
    %127 = vmatpush.bf16.msra.mxu0 0
    %128 = vmatpush.bf16.msra.mxu0 0
    %129 = vmatpush.bf16.msra.mxu0 %v113
    %130 = vmatpush.bf16.msra.mxu0 %v111
    %131 = vmatmul.bf16.gmra.mxu0 %v121
    %v132 = vpop.f32.mrf.mxu0
    %v133 = vadd.f32 %v95, %v132
    %v134 = vpop.f32.mrf.mxu0
    %v135 = vadd.f32 %v95, %v134
    %136 = vdwg.mxu0
    %137 = vmatpush.bf16.msra.mxu0 0
    %138 = vmatpush.bf16.msra.mxu0 0
    %139 = vmatpush.bf16.msra.mxu0 0
    %140 = vmatpush.bf16.msra.mxu0 0
    %141 = vmatpush.bf16.msra.mxu0 0
    %142 = vmatpush.bf16.msra.mxu0 0
    %143 = vmatpush.bf16.msra.mxu0 %v114
    %144 = vmatpush.bf16.msra.mxu0 %v112
    %145 = vmatmul.bf16.gmra.mxu0 %v121
    %v146 = vpop.f32.mrf.mxu0
    %v147 = vadd.f32 %v96, %v146
    %v148 = vpop.f32.mrf.mxu0
    %v149 = vadd.f32 %v96, %v148
    %150 = vdwg.mxu0
    %vm151 = vcmp.gt.f32.partialorder %v133, 0.0
    %vm152 = vcmp.gt.f32.partialorder %v147, 0.0
    %vm153 = vcmp.gt.f32.partialorder %v135, 0.0
    %vm154 = vcmp.gt.f32.partialorder %v149, 0.0
    %v155 = vmul.f32 %v133, 0.1
    %v156 = vmul.f32 %v147, 0.1
    %v157 = vmul.f32 %v135, 0.1
    %v158 = vmul.f32 %v149, 0.1
    %v159 = vsel %vm151, %v133, %v155
    %v160 = vsel %vm152, %v147, %v156
    %v161 = vsel %vm153, %v135, %v157
    %v162 = vsel %vm154, %v149, %v158
    %v163 = vpack.c.bf16 %v161, %v159
    %v164 = vpack.c.bf16 %v162, %v160
    %v165 = vld [vmem:[#allocation2] sm:$0xff]
    %v166 = vld [vmem:[#allocation2 + $0x8] sm:$0xff]
    %v167 = vld [vmem:[#allocation2 + $0x10] sm:$0xff]
    %v168 = vld [vmem:[#allocation2 + $0x18] sm:$0xff]
    %v169 = vld [vmem:[#allocation2 + $0x20] sm:$0xff]
    %v170 = vld [vmem:[#allocation2 + $0x28] sm:$0xff]
    %v171 = vld [vmem:[#allocation2 + $0x30] sm:$0xff]
    %v172 = vld [vmem:[#allocation2 + $0x38] sm:$0xff]
    %v173 = vld [vmem:[#allocation2 + $0x40] sm:$0xff]
    %v174 = vld [vmem:[#allocation2 + $0x48] sm:$0xff]
    %v175 = vld [vmem:[#allocation2 + $0x50] sm:$0xff]
    %v176 = vld [vmem:[#allocation2 + $0x58] sm:$0xff]
    %v177 = vld [vmem:[#allocation2 + $0x60] sm:$0xff]
    %v178 = vld [vmem:[#allocation2 + $0x68] sm:$0xff]
    %v179 = vld [vmem:[#allocation2 + $0x70] sm:$0xff]
    %v180 = vld [vmem:[#allocation2 + $0x78] sm:$0xff]
    %v181 = vld [vmem:[#allocation2 + $0x80] sm:$0xff]
    %v182 = vld [vmem:[#allocation2 + $0x88] sm:$0xff]
    %v183 = vld [vmem:[#allocation2 + $0x90] sm:$0xff]
    %v184 = vld [vmem:[#allocation2 + $0x98] sm:$0xff]
    %v185 = vld [vmem:[#allocation2 + $0xa0] sm:$0xff]
    %v186 = vld [vmem:[#allocation2 + $0xa8] sm:$0xff]
    %v187 = vld [vmem:[#allocation2 + $0xb0] sm:$0xff]
    %v188 = vld [vmem:[#allocation2 + $0xb8] sm:$0xff]
    %v189 = vld [vmem:[#allocation2 + $0xc0] sm:$0xff]
    %v190 = vld [vmem:[#allocation2 + $0xc8] sm:$0xff]
    %v191 = vld [vmem:[#allocation2 + $0xd0] sm:$0xff]
    %v192 = vld [vmem:[#allocation2 + $0xd8] sm:$0xff]
    %v193 = vld [vmem:[#allocation2 + $0xe0] sm:$0xff]
    %v194 = vld [vmem:[#allocation2 + $0xe8] sm:$0xff]
    %v195 = vld [vmem:[#allocation2 + $0xf0] sm:$0xff]
    %v196 = vld [vmem:[#allocation2 + $0xf8] sm:$0xff]
    %v197 = vld [vmem:[%s4] sm:$0x3]
    %v199 = vperm.slane %v197, 0
    %v200 = vperm.slane %v197, 1
    %v235 = vunpack.c.l.b16 %v165
    %v236 = vunpack.c.h.b16 %v165
    %v237 = vunpack.c.l.b16 %v166
    %v238 = vunpack.c.h.b16 %v166
    %v239 = vunpack.c.l.b16 %v167
    %v240 = vunpack.c.h.b16 %v167
    %v241 = vunpack.c.l.b16 %v168
    %v242 = vunpack.c.h.b16 %v168
    %v243 = vunpack.c.l.b16 %v169
    %v244 = vunpack.c.h.b16 %v169
    %v245 = vunpack.c.l.b16 %v170
    %v246 = vunpack.c.h.b16 %v170
    %v247 = vunpack.c.l.b16 %v171
    %v248 = vunpack.c.h.b16 %v171
    %v249 = vunpack.c.l.b16 %v172
    %v250 = vunpack.c.h.b16 %v172
    %v251 = vunpack.c.l.b16 %v173
    %v252 = vunpack.c.h.b16 %v173
    %v253 = vunpack.c.l.b16 %v174
    %v254 = vunpack.c.h.b16 %v174
    %v255 = vunpack.c.l.b16 %v175
    %v256 = vunpack.c.h.b16 %v175
    %v257 = vunpack.c.l.b16 %v176
    %v258 = vunpack.c.h.b16 %v176
    %v259 = vunpack.c.l.b16 %v177
    %v260 = vunpack.c.h.b16 %v177
    %v261 = vunpack.c.l.b16 %v178
    %v262 = vunpack.c.h.b16 %v178
    %v263 = vunpack.c.l.b16 %v179
    %v264 = vunpack.c.h.b16 %v179
    %v265 = vunpack.c.l.b16 %v180
    %v266 = vunpack.c.h.b16 %v180
    %v267 = vunpack.c.l.b16 %v181
    %v268 = vunpack.c.h.b16 %v181
    %v269 = vunpack.c.l.b16 %v182
    %v270 = vunpack.c.h.b16 %v182
    %v271 = vunpack.c.l.b16 %v183
    %v272 = vunpack.c.h.b16 %v183
    %v273 = vunpack.c.l.b16 %v184
    %v274 = vunpack.c.h.b16 %v184
    %v275 = vunpack.c.l.b16 %v185
    %v276 = vunpack.c.h.b16 %v185
    %v277 = vunpack.c.l.b16 %v186
    %v278 = vunpack.c.h.b16 %v186
    %v279 = vunpack.c.l.b16 %v187
    %v280 = vunpack.c.h.b16 %v187
    %v281 = vunpack.c.l.b16 %v188
    %v282 = vunpack.c.h.b16 %v188
    %v283 = vunpack.c.l.b16 %v189
    %v284 = vunpack.c.h.b16 %v189
    %v285 = vunpack.c.l.b16 %v190
    %v286 = vunpack.c.h.b16 %v190
    %v287 = vunpack.c.l.b16 %v191
    %v288 = vunpack.c.h.b16 %v191
    %v289 = vunpack.c.l.b16 %v192
    %v290 = vunpack.c.h.b16 %v192
    %v291 = vunpack.c.l.b16 %v193
    %v292 = vunpack.c.h.b16 %v193
    %v293 = vunpack.c.l.b16 %v194
    %v294 = vunpack.c.h.b16 %v194
    %v295 = vunpack.c.l.b16 %v195
    %v296 = vunpack.c.h.b16 %v195
    %v297 = vunpack.c.l.b16 %v196
    %v298 = vunpack.c.h.b16 %v196
    %v299 = vpack.c.b16 %v237, %v235
    %v300 = vpack.c.b16 %v238, %v236
    %v301 = vpack.c.b16 %v241, %v239
    %v302 = vpack.c.b16 %v242, %v240
    %v303 = vpack.c.b16 %v245, %v243
    %v304 = vpack.c.b16 %v246, %v244
    %v305 = vpack.c.b16 %v249, %v247
    %v306 = vpack.c.b16 %v250, %v248
    %v307 = vpack.c.b16 %v253, %v251
    %v308 = vpack.c.b16 %v254, %v252
    %v309 = vpack.c.b16 %v257, %v255
    %v310 = vpack.c.b16 %v258, %v256
    %v311 = vpack.c.b16 %v261, %v259
    %v312 = vpack.c.b16 %v262, %v260
    %v313 = vpack.c.b16 %v265, %v263
    %v314 = vpack.c.b16 %v266, %v264
    %v315 = vpack.c.b16 %v269, %v267
    %v316 = vpack.c.b16 %v270, %v268
    %v317 = vpack.c.b16 %v273, %v271
    %v318 = vpack.c.b16 %v274, %v272
    %v319 = vpack.c.b16 %v277, %v275
    %v320 = vpack.c.b16 %v278, %v276
    %v321 = vpack.c.b16 %v281, %v279
    %v322 = vpack.c.b16 %v282, %v280
    %v323 = vpack.c.b16 %v285, %v283
    %v324 = vpack.c.b16 %v286, %v284
    %v325 = vpack.c.b16 %v289, %v287
    %v326 = vpack.c.b16 %v290, %v288
    %v327 = vpack.c.b16 %v293, %v291
    %v328 = vpack.c.b16 %v294, %v292
    %v329 = vpack.c.b16 %v297, %v295
    %v330 = vpack.c.b16 %v298, %v296
    %363 = vmatpush.bf16.msra.mxu0 %v313
    %364 = vmatpush.bf16.msra.mxu0 %v311
    %365 = vmatpush.bf16.msra.mxu0 %v309
    %366 = vmatpush.bf16.msra.mxu0 %v307
    %367 = vmatpush.bf16.msra.mxu0 %v305
    %368 = vmatpush.bf16.msra.mxu0 %v303
    %369 = vmatpush.bf16.msra.mxu0 %v301
    %370 = vmatpush.bf16.msra.mxu0 %v299
    %371 = vmatmul.bf16.gmra.mxu0 %v163
    %v372 = vpop.f32.mrf.mxu0
    %v373 = vadd.f32 %v199, %v372
    %v374 = vpop.f32.mrf.mxu0
    %v375 = vadd.f32 %v199, %v374
    %376 = vdwg.mxu0
    %377 = vmatpush.bf16.msra.mxu0 %v329
    %378 = vmatpush.bf16.msra.mxu0 %v327
    %379 = vmatpush.bf16.msra.mxu0 %v325
    %380 = vmatpush.bf16.msra.mxu0 %v323
    %381 = vmatpush.bf16.msra.mxu0 %v321
    %382 = vmatpush.bf16.msra.mxu0 %v319
    %383 = vmatpush.bf16.msra.mxu0 %v317
    %384 = vmatpush.bf16.msra.mxu0 %v315
    %385 = vmatmul.bf16.gmra.mxu0 %v164
    %v386 = vpop.f32.mrf.mxu0
    %v387 = vadd.f32 %v373, %v386
    %v388 = vpop.f32.mrf.mxu0
    %v389 = vadd.f32 %v375, %v388
    %390 = vdwg.mxu0
    %391 = vmatpush.bf16.msra.mxu0 %v314
    %392 = vmatpush.bf16.msra.mxu0 %v312
    %393 = vmatpush.bf16.msra.mxu0 %v310
    %394 = vmatpush.bf16.msra.mxu0 %v308
    %395 = vmatpush.bf16.msra.mxu0 %v306
    %396 = vmatpush.bf16.msra.mxu0 %v304
    %397 = vmatpush.bf16.msra.mxu0 %v302
    %398 = vmatpush.bf16.msra.mxu0 %v300
    %399 = vmatmul.bf16.gmra.mxu0 %v163
    %v400 = vpop.f32.mrf.mxu0
    %v401 = vadd.f32 %v200, %v400
    %v402 = vpop.f32.mrf.mxu0
    %v403 = vadd.f32 %v200, %v402
    %404 = vdwg.mxu0
    %405 = vmatpush.bf16.msra.mxu0 %v330
    %406 = vmatpush.bf16.msra.mxu0 %v328
    %407 = vmatpush.bf16.msra.mxu0 %v326
    %408 = vmatpush.bf16.msra.mxu0 %v324
    %409 = vmatpush.bf16.msra.mxu0 %v322
    %410 = vmatpush.bf16.msra.mxu0 %v320
    %411 = vmatpush.bf16.msra.mxu0 %v318
    %412 = vmatpush.bf16.msra.mxu0 %v316
    %413 = vmatmul.bf16.gmra.mxu0 %v164
    %v414 = vpop.f32.mrf.mxu0
    %v415 = vadd.f32 %v401, %v414
    %v416 = vpop.f32.mrf.mxu0
    %v417 = vadd.f32 %v403, %v416
    %418 = vdwg.mxu0
    %vm419 = vcmp.gt.f32.partialorder %v387, 0.0
    %vm420 = vcmp.gt.f32.partialorder %v415, 0.0
    %vm421 = vcmp.gt.f32.partialorder %v389, 0.0
    %vm422 = vcmp.gt.f32.partialorder %v417, 0.0
    %v423 = vmul.f32 %v387, 0.1
    %v424 = vmul.f32 %v415, 0.1
    %v425 = vmul.f32 %v389, 0.1
    %v426 = vmul.f32 %v417, 0.1
    %v427 = vsel %vm419, %v387, %v423
    %v428 = vsel %vm420, %v415, %v424
    %v429 = vsel %vm421, %v389, %v425
    %v430 = vsel %vm422, %v417, %v426
    %v431 = vpack.c.bf16 %v429, %v427
    %v432 = vpack.c.bf16 %v430, %v428
    %v433 = vld [vmem:[#allocation4] sm:$0xff]
    %v434 = vld [vmem:[#allocation4 + $0x8] sm:$0xff]
    %v435 = vld [vmem:[#allocation4 + $0x10] sm:$0xff]
    %v436 = vld [vmem:[#allocation4 + $0x18] sm:$0xff]
    %v437 = vld [vmem:[#allocation4 + $0x20] sm:$0xff]
    %v438 = vld [vmem:[#allocation4 + $0x28] sm:$0xff]
    %v439 = vld [vmem:[#allocation4 + $0x30] sm:$0xff]
    %v440 = vld [vmem:[#allocation4 + $0x38] sm:$0xff]
    %v441 = vld [vmem:[#allocation4 + $0x40] sm:$0xff]
    %v442 = vld [vmem:[#allocation4 + $0x48] sm:$0xff]
    %v443 = vld [vmem:[#allocation4 + $0x50] sm:$0xff]
    %v444 = vld [vmem:[#allocation4 + $0x58] sm:$0xff]
    %v445 = vld [vmem:[#allocation4 + $0x60] sm:$0xff]
    %v446 = vld [vmem:[#allocation4 + $0x68] sm:$0xff]
    %v447 = vld [vmem:[#allocation4 + $0x70] sm:$0xff]
    %v448 = vld [vmem:[#allocation4 + $0x78] sm:$0xff]
    %v449 = vld [vmem:[#allocation4 + $0x80] sm:$0xff]
    %v450 = vld [vmem:[#allocation4 + $0x88] sm:$0xff]
    %v451 = vld [vmem:[#allocation4 + $0x90] sm:$0xff]
    %v452 = vld [vmem:[#allocation4 + $0x98] sm:$0xff]
    %v453 = vld [vmem:[#allocation4 + $0xa0] sm:$0xff]
    %v454 = vld [vmem:[#allocation4 + $0xa8] sm:$0xff]
    %v455 = vld [vmem:[#allocation4 + $0xb0] sm:$0xff]
    %v456 = vld [vmem:[#allocation4 + $0xb8] sm:$0xff]
    %v457 = vld [vmem:[#allocation4 + $0xc0] sm:$0xff]
    %v458 = vld [vmem:[#allocation4 + $0xc8] sm:$0xff]
    %v459 = vld [vmem:[#allocation4 + $0xd0] sm:$0xff]
    %v460 = vld [vmem:[#allocation4 + $0xd8] sm:$0xff]
    %v461 = vld [vmem:[#allocation4 + $0xe0] sm:$0xff]
    %v462 = vld [vmem:[#allocation4 + $0xe8] sm:$0xff]
    %v463 = vld [vmem:[#allocation4 + $0xf0] sm:$0xff]
    %v464 = vld [vmem:[#allocation4 + $0xf8] sm:$0xff]
    %v465 = vld [vmem:[%s6] sm:$0x3]
    %v467 = vperm.slane %v465, 0
    %v468 = vperm.slane %v465, 1
    %v503 = vunpack.c.l.b16 %v433
    %v504 = vunpack.c.h.b16 %v433
    %v505 = vunpack.c.l.b16 %v434
    %v506 = vunpack.c.h.b16 %v434
    %v507 = vunpack.c.l.b16 %v435
    %v508 = vunpack.c.h.b16 %v435
    %v509 = vunpack.c.l.b16 %v436
    %v510 = vunpack.c.h.b16 %v436
    %v511 = vunpack.c.l.b16 %v437
    %v512 = vunpack.c.h.b16 %v437
    %v513 = vunpack.c.l.b16 %v438
    %v514 = vunpack.c.h.b16 %v438
    %v515 = vunpack.c.l.b16 %v439
    %v516 = vunpack.c.h.b16 %v439
    %v517 = vunpack.c.l.b16 %v440
    %v518 = vunpack.c.h.b16 %v440
    %v519 = vunpack.c.l.b16 %v441
    %v520 = vunpack.c.h.b16 %v441
    %v521 = vunpack.c.l.b16 %v442
    %v522 = vunpack.c.h.b16 %v442
    %v523 = vunpack.c.l.b16 %v443
    %v524 = vunpack.c.h.b16 %v443
    %v525 = vunpack.c.l.b16 %v444
    %v526 = vunpack.c.h.b16 %v444
    %v527 = vunpack.c.l.b16 %v445
    %v528 = vunpack.c.h.b16 %v445
    %v529 = vunpack.c.l.b16 %v446
    %v530 = vunpack.c.h.b16 %v446
    %v531 = vunpack.c.l.b16 %v447
    %v532 = vunpack.c.h.b16 %v447
    %v533 = vunpack.c.l.b16 %v448
    %v534 = vunpack.c.h.b16 %v448
    %v535 = vunpack.c.l.b16 %v449
    %v536 = vunpack.c.h.b16 %v449
    %v537 = vunpack.c.l.b16 %v450
    %v538 = vunpack.c.h.b16 %v450
    %v539 = vunpack.c.l.b16 %v451
    %v540 = vunpack.c.h.b16 %v451
    %v541 = vunpack.c.l.b16 %v452
    %v542 = vunpack.c.h.b16 %v452
    %v543 = vunpack.c.l.b16 %v453
    %v544 = vunpack.c.h.b16 %v453
    %v545 = vunpack.c.l.b16 %v454
    %v546 = vunpack.c.h.b16 %v454
    %v547 = vunpack.c.l.b16 %v455
    %v548 = vunpack.c.h.b16 %v455
    %v549 = vunpack.c.l.b16 %v456
    %v550 = vunpack.c.h.b16 %v456
    %v551 = vunpack.c.l.b16 %v457
    %v552 = vunpack.c.h.b16 %v457
    %v553 = vunpack.c.l.b16 %v458
    %v554 = vunpack.c.h.b16 %v458
    %v555 = vunpack.c.l.b16 %v459
    %v556 = vunpack.c.h.b16 %v459
    %v557 = vunpack.c.l.b16 %v460
    %v558 = vunpack.c.h.b16 %v460
    %v559 = vunpack.c.l.b16 %v461
    %v560 = vunpack.c.h.b16 %v461
    %v561 = vunpack.c.l.b16 %v462
    %v562 = vunpack.c.h.b16 %v462
    %v563 = vunpack.c.l.b16 %v463
    %v564 = vunpack.c.h.b16 %v463
    %v565 = vunpack.c.l.b16 %v464
    %v566 = vunpack.c.h.b16 %v464
    %v567 = vpack.c.b16 %v505, %v503
    %v568 = vpack.c.b16 %v506, %v504
    %v569 = vpack.c.b16 %v509, %v507
    %v570 = vpack.c.b16 %v510, %v508
    %v571 = vpack.c.b16 %v513, %v511
    %v572 = vpack.c.b16 %v514, %v512
    %v573 = vpack.c.b16 %v517, %v515
    %v574 = vpack.c.b16 %v518, %v516
    %v575 = vpack.c.b16 %v521, %v519
    %v576 = vpack.c.b16 %v522, %v520
    %v577 = vpack.c.b16 %v525, %v523
    %v578 = vpack.c.b16 %v526, %v524
    %v579 = vpack.c.b16 %v529, %v527
    %v580 = vpack.c.b16 %v530, %v528
    %v581 = vpack.c.b16 %v533, %v531
    %v582 = vpack.c.b16 %v534, %v532
    %v583 = vpack.c.b16 %v537, %v535
    %v584 = vpack.c.b16 %v538, %v536
    %v585 = vpack.c.b16 %v541, %v539
    %v586 = vpack.c.b16 %v542, %v540
    %v587 = vpack.c.b16 %v545, %v543
    %v588 = vpack.c.b16 %v546, %v544
    %v589 = vpack.c.b16 %v549, %v547
    %v590 = vpack.c.b16 %v550, %v548
    %v591 = vpack.c.b16 %v553, %v551
    %v592 = vpack.c.b16 %v554, %v552
    %v593 = vpack.c.b16 %v557, %v555
    %v594 = vpack.c.b16 %v558, %v556
    %v595 = vpack.c.b16 %v561, %v559
    %v596 = vpack.c.b16 %v562, %v560
    %v597 = vpack.c.b16 %v565, %v563
    %v598 = vpack.c.b16 %v566, %v564
    %631 = vmatpush.bf16.msra.mxu0 %v581
    %632 = vmatpush.bf16.msra.mxu0 %v579
    %633 = vmatpush.bf16.msra.mxu0 %v577
    %634 = vmatpush.bf16.msra.mxu0 %v575
    %635 = vmatpush.bf16.msra.mxu0 %v573
    %636 = vmatpush.bf16.msra.mxu0 %v571
    %637 = vmatpush.bf16.msra.mxu0 %v569
    %638 = vmatpush.bf16.msra.mxu0 %v567
    %639 = vmatmul.bf16.gmra.mxu0 %v431
    %v640 = vpop.f32.mrf.mxu0
    %v641 = vadd.f32 %v467, %v640
    %v642 = vpop.f32.mrf.mxu0
    %v643 = vadd.f32 %v467, %v642
    %644 = vdwg.mxu0
    %645 = vmatpush.bf16.msra.mxu0 %v597
    %646 = vmatpush.bf16.msra.mxu0 %v595
    %647 = vmatpush.bf16.msra.mxu0 %v593
    %648 = vmatpush.bf16.msra.mxu0 %v591
    %649 = vmatpush.bf16.msra.mxu0 %v589
    %650 = vmatpush.bf16.msra.mxu0 %v587
    %651 = vmatpush.bf16.msra.mxu0 %v585
    %652 = vmatpush.bf16.msra.mxu0 %v583
    %653 = vmatmul.bf16.gmra.mxu0 %v432
    %v654 = vpop.f32.mrf.mxu0
    %v655 = vadd.f32 %v641, %v654
    %v656 = vpop.f32.mrf.mxu0
    %v657 = vadd.f32 %v643, %v656
    %658 = vdwg.mxu0
    %659 = vmatpush.bf16.msra.mxu0 %v582
    %660 = vmatpush.bf16.msra.mxu0 %v580
    %661 = vmatpush.bf16.msra.mxu0 %v578
    %662 = vmatpush.bf16.msra.mxu0 %v576
    %663 = vmatpush.bf16.msra.mxu0 %v574
    %664 = vmatpush.bf16.msra.mxu0 %v572
    %665 = vmatpush.bf16.msra.mxu0 %v570
    %666 = vmatpush.bf16.msra.mxu0 %v568
    %667 = vmatmul.bf16.gmra.mxu0 %v431
    %v668 = vpop.f32.mrf.mxu0
    %v669 = vadd.f32 %v468, %v668
    %v670 = vpop.f32.mrf.mxu0
    %v671 = vadd.f32 %v468, %v670
    %672 = vdwg.mxu0
    %673 = vmatpush.bf16.msra.mxu0 %v598
    %674 = vmatpush.bf16.msra.mxu0 %v596
    %675 = vmatpush.bf16.msra.mxu0 %v594
    %676 = vmatpush.bf16.msra.mxu0 %v592
    %677 = vmatpush.bf16.msra.mxu0 %v590
    %678 = vmatpush.bf16.msra.mxu0 %v588
    %679 = vmatpush.bf16.msra.mxu0 %v586
    %680 = vmatpush.bf16.msra.mxu0 %v584
    %681 = vmatmul.bf16.gmra.mxu0 %v432
    %v682 = vpop.f32.mrf.mxu0
    %v683 = vadd.f32 %v669, %v682
    %v684 = vpop.f32.mrf.mxu0
    %v685 = vadd.f32 %v671, %v684
    %686 = vdwg.mxu0
    %vm687 = vcmp.gt.f32.partialorder %v655, 0.0
    %vm688 = vcmp.gt.f32.partialorder %v683, 0.0
    %vm689 = vcmp.gt.f32.partialorder %v657, 0.0
    %vm690 = vcmp.gt.f32.partialorder %v685, 0.0
    %v691 = vmul.f32 %v655, 0.1
    %v692 = vmul.f32 %v683, 0.1
    %v693 = vmul.f32 %v657, 0.1
    %v694 = vmul.f32 %v685, 0.1
    %v695 = vsel %vm687, %v655, %v691
    %v696 = vsel %vm688, %v683, %v692
    %v697 = vsel %vm689, %v657, %v693
    %v698 = vsel %vm690, %v685, %v694
    %v699 = vpack.c.bf16 %v697, %v695
    %v700 = vpack.c.bf16 %v698, %v696
    %v701 = vld [vmem:[#allocation6] sm:$0xff]
    %v702 = vld [vmem:[#allocation6 + $0x8] sm:$0xff]
    %v703 = vld [vmem:[#allocation6 + $0x10] sm:$0xff]
    %v704 = vld [vmem:[#allocation6 + $0x18] sm:$0xff]
    %v705 = vld [vmem:[#allocation6 + $0x20] sm:$0xff]
    %v706 = vld [vmem:[#allocation6 + $0x28] sm:$0xff]
    %v707 = vld [vmem:[#allocation6 + $0x30] sm:$0xff]
    %v708 = vld [vmem:[#allocation6 + $0x38] sm:$0xff]
    %v709 = vld [vmem:[#allocation6 + $0x40] sm:$0xff]
    %v710 = vld [vmem:[#allocation6 + $0x48] sm:$0xff]
    %v711 = vld [vmem:[#allocation6 + $0x50] sm:$0xff]
    %v712 = vld [vmem:[#allocation6 + $0x58] sm:$0xff]
    %v713 = vld [vmem:[#allocation6 + $0x60] sm:$0xff]
    %v714 = vld [vmem:[#allocation6 + $0x68] sm:$0xff]
    %v715 = vld [vmem:[#allocation6 + $0x70] sm:$0xff]
    %v716 = vld [vmem:[#allocation6 + $0x78] sm:$0xff]
    %v717 = vld [vmem:[#allocation6 + $0x80] sm:$0xff]
    %v718 = vld [vmem:[#allocation6 + $0x88] sm:$0xff]
    %v719 = vld [vmem:[#allocation6 + $0x90] sm:$0xff]
    %v720 = vld [vmem:[#allocation6 + $0x98] sm:$0xff]
    %v721 = vld [vmem:[#allocation6 + $0xa0] sm:$0xff]
    %v722 = vld [vmem:[#allocation6 + $0xa8] sm:$0xff]
    %v723 = vld [vmem:[#allocation6 + $0xb0] sm:$0xff]
    %v724 = vld [vmem:[#allocation6 + $0xb8] sm:$0xff]
    %v725 = vld [vmem:[#allocation6 + $0xc0] sm:$0xff]
    %v726 = vld [vmem:[#allocation6 + $0xc8] sm:$0xff]
    %v727 = vld [vmem:[#allocation6 + $0xd0] sm:$0xff]
    %v728 = vld [vmem:[#allocation6 + $0xd8] sm:$0xff]
    %v729 = vld [vmem:[#allocation6 + $0xe0] sm:$0xff]
    %v730 = vld [vmem:[#allocation6 + $0xe8] sm:$0xff]
    %v731 = vld [vmem:[#allocation6 + $0xf0] sm:$0xff]
    %v732 = vld [vmem:[#allocation6 + $0xf8] sm:$0xff]
    %v733 = vld [vmem:[%s8] sm:$0x3]
    %v735 = vperm.slane %v733, 0
    %v736 = vperm.slane %v733, 1
    %v771 = vunpack.c.l.b16 %v701
    %v772 = vunpack.c.h.b16 %v701
    %v773 = vunpack.c.l.b16 %v702
    %v774 = vunpack.c.h.b16 %v702
    %v775 = vunpack.c.l.b16 %v703
    %v776 = vunpack.c.h.b16 %v703
    %v777 = vunpack.c.l.b16 %v704
    %v778 = vunpack.c.h.b16 %v704
    %v779 = vunpack.c.l.b16 %v705
    %v780 = vunpack.c.h.b16 %v705
    %v781 = vunpack.c.l.b16 %v706
    %v782 = vunpack.c.h.b16 %v706
    %v783 = vunpack.c.l.b16 %v707
    %v784 = vunpack.c.h.b16 %v707
    %v785 = vunpack.c.l.b16 %v708
    %v786 = vunpack.c.h.b16 %v708
    %v787 = vunpack.c.l.b16 %v709
    %v788 = vunpack.c.h.b16 %v709
    %v789 = vunpack.c.l.b16 %v710
    %v790 = vunpack.c.h.b16 %v710
    %v791 = vunpack.c.l.b16 %v711
    %v792 = vunpack.c.h.b16 %v711
    %v793 = vunpack.c.l.b16 %v712
    %v794 = vunpack.c.h.b16 %v712
    %v795 = vunpack.c.l.b16 %v713
    %v796 = vunpack.c.h.b16 %v713
    %v797 = vunpack.c.l.b16 %v714
    %v798 = vunpack.c.h.b16 %v714
    %v799 = vunpack.c.l.b16 %v715
    %v800 = vunpack.c.h.b16 %v715
    %v801 = vunpack.c.l.b16 %v716
    %v802 = vunpack.c.h.b16 %v716
    %v803 = vunpack.c.l.b16 %v717
    %v804 = vunpack.c.h.b16 %v717
    %v805 = vunpack.c.l.b16 %v718
    %v806 = vunpack.c.h.b16 %v718
    %v807 = vunpack.c.l.b16 %v719
    %v808 = vunpack.c.h.b16 %v719
    %v809 = vunpack.c.l.b16 %v720
    %v810 = vunpack.c.h.b16 %v720
    %v811 = vunpack.c.l.b16 %v721
    %v812 = vunpack.c.h.b16 %v721
    %v813 = vunpack.c.l.b16 %v722
    %v814 = vunpack.c.h.b16 %v722
    %v815 = vunpack.c.l.b16 %v723
    %v816 = vunpack.c.h.b16 %v723
    %v817 = vunpack.c.l.b16 %v724
    %v818 = vunpack.c.h.b16 %v724
    %v819 = vunpack.c.l.b16 %v725
    %v820 = vunpack.c.h.b16 %v725
    %v821 = vunpack.c.l.b16 %v726
    %v822 = vunpack.c.h.b16 %v726
    %v823 = vunpack.c.l.b16 %v727
    %v824 = vunpack.c.h.b16 %v727
    %v825 = vunpack.c.l.b16 %v728
    %v826 = vunpack.c.h.b16 %v728
    %v827 = vunpack.c.l.b16 %v729
    %v828 = vunpack.c.h.b16 %v729
    %v829 = vunpack.c.l.b16 %v730
    %v830 = vunpack.c.h.b16 %v730
    %v831 = vunpack.c.l.b16 %v731
    %v832 = vunpack.c.h.b16 %v731
    %v833 = vunpack.c.l.b16 %v732
    %v834 = vunpack.c.h.b16 %v732
    %v835 = vpack.c.b16 %v773, %v771
    %v836 = vpack.c.b16 %v774, %v772
    %v837 = vpack.c.b16 %v777, %v775
    %v838 = vpack.c.b16 %v778, %v776
    %v839 = vpack.c.b16 %v781, %v779
    %v840 = vpack.c.b16 %v782, %v780
    %v841 = vpack.c.b16 %v785, %v783
    %v842 = vpack.c.b16 %v786, %v784
    %v843 = vpack.c.b16 %v789, %v787
    %v844 = vpack.c.b16 %v790, %v788
    %v845 = vpack.c.b16 %v793, %v791
    %v846 = vpack.c.b16 %v794, %v792
    %v847 = vpack.c.b16 %v797, %v795
    %v848 = vpack.c.b16 %v798, %v796
    %v849 = vpack.c.b16 %v801, %v799
    %v850 = vpack.c.b16 %v802, %v800
    %v851 = vpack.c.b16 %v805, %v803
    %v852 = vpack.c.b16 %v806, %v804
    %v853 = vpack.c.b16 %v809, %v807
    %v854 = vpack.c.b16 %v810, %v808
    %v855 = vpack.c.b16 %v813, %v811
    %v856 = vpack.c.b16 %v814, %v812
    %v857 = vpack.c.b16 %v817, %v815
    %v858 = vpack.c.b16 %v818, %v816
    %v859 = vpack.c.b16 %v821, %v819
    %v860 = vpack.c.b16 %v822, %v820
    %v861 = vpack.c.b16 %v825, %v823
    %v862 = vpack.c.b16 %v826, %v824
    %v863 = vpack.c.b16 %v829, %v827
    %v864 = vpack.c.b16 %v830, %v828
    %v865 = vpack.c.b16 %v833, %v831
    %v866 = vpack.c.b16 %v834, %v832
    %899 = vmatpush.bf16.msra.mxu0 %v849
    %900 = vmatpush.bf16.msra.mxu0 %v847
    %901 = vmatpush.bf16.msra.mxu0 %v845
    %902 = vmatpush.bf16.msra.mxu0 %v843
    %903 = vmatpush.bf16.msra.mxu0 %v841
    %904 = vmatpush.bf16.msra.mxu0 %v839
    %905 = vmatpush.bf16.msra.mxu0 %v837
    %906 = vmatpush.bf16.msra.mxu0 %v835
    %907 = vmatmul.bf16.gmra.mxu0 %v699
    %v908 = vpop.f32.mrf.mxu0
    %v909 = vadd.f32 %v735, %v908
    %v910 = vpop.f32.mrf.mxu0
    %v911 = vadd.f32 %v735, %v910
    %912 = vdwg.mxu0
    %913 = vmatpush.bf16.msra.mxu0 %v865
    %914 = vmatpush.bf16.msra.mxu0 %v863
    %915 = vmatpush.bf16.msra.mxu0 %v861
    %916 = vmatpush.bf16.msra.mxu0 %v859
    %917 = vmatpush.bf16.msra.mxu0 %v857
    %918 = vmatpush.bf16.msra.mxu0 %v855
    %919 = vmatpush.bf16.msra.mxu0 %v853
    %920 = vmatpush.bf16.msra.mxu0 %v851
    %921 = vmatmul.bf16.gmra.mxu0 %v700
    %v922 = vpop.f32.mrf.mxu0
    %v923 = vadd.f32 %v909, %v922
    %v924 = vpop.f32.mrf.mxu0
    %v925 = vadd.f32 %v911, %v924
    %926 = vdwg.mxu0
    %927 = vmatpush.bf16.msra.mxu0 %v850
    %928 = vmatpush.bf16.msra.mxu0 %v848
    %929 = vmatpush.bf16.msra.mxu0 %v846
    %930 = vmatpush.bf16.msra.mxu0 %v844
    %931 = vmatpush.bf16.msra.mxu0 %v842
    %932 = vmatpush.bf16.msra.mxu0 %v840
    %933 = vmatpush.bf16.msra.mxu0 %v838
    %934 = vmatpush.bf16.msra.mxu0 %v836
    %935 = vmatmul.bf16.gmra.mxu0 %v699
    %v936 = vpop.f32.mrf.mxu0
    %v937 = vadd.f32 %v736, %v936
    %v938 = vpop.f32.mrf.mxu0
    %v939 = vadd.f32 %v736, %v938
    %940 = vdwg.mxu0
    %941 = vmatpush.bf16.msra.mxu0 %v866
    %942 = vmatpush.bf16.msra.mxu0 %v864
    %943 = vmatpush.bf16.msra.mxu0 %v862
    %944 = vmatpush.bf16.msra.mxu0 %v860
    %945 = vmatpush.bf16.msra.mxu0 %v858
    %946 = vmatpush.bf16.msra.mxu0 %v856
    %947 = vmatpush.bf16.msra.mxu0 %v854
    %948 = vmatpush.bf16.msra.mxu0 %v852
    %949 = vmatmul.bf16.gmra.mxu0 %v700
    %v950 = vpop.f32.mrf.mxu0
    %v951 = vadd.f32 %v937, %v950
    %v952 = vpop.f32.mrf.mxu0
    %v953 = vadd.f32 %v939, %v952
    %954 = vdwg.mxu0
    %vm955 = vcmp.gt.f32.partialorder %v923, 0.0
    %vm956 = vcmp.gt.f32.partialorder %v951, 0.0
    %vm957 = vcmp.gt.f32.partialorder %v925, 0.0
    %vm958 = vcmp.gt.f32.partialorder %v953, 0.0
    %v959 = vmul.f32 %v923, 0.1
    %v960 = vmul.f32 %v951, 0.1
    %v961 = vmul.f32 %v925, 0.1
    %v962 = vmul.f32 %v953, 0.1
    %v963 = vsel %vm955, %v923, %v959
    %v964 = vsel %vm956, %v951, %v960
    %v965 = vsel %vm957, %v925, %v961
    %v966 = vsel %vm958, %v953, %v962
    %v967 = vpack.c.bf16 %v965, %v963
    %v968 = vpack.c.bf16 %v966, %v964
    %v969 = vld [vmem:[%s9] sm:$0xf]
    %v970 = vld [vmem:[%s9 + $0x4] sm:$0xf]
    %v971 = vld [vmem:[%s9 + $0x8] sm:$0xf]
    %v972 = vld [vmem:[%s9 + $0xc] sm:$0xf]
    %v973 = vld [vmem:[%s9 + $0x10] sm:$0xf]
    %v974 = vld [vmem:[%s9 + $0x14] sm:$0xf]
    %v975 = vld [vmem:[%s9 + $0x18] sm:$0xf]
    %v976 = vld [vmem:[%s9 + $0x1c] sm:$0xf]
    %v977 = vld [vmem:[%s9 + $0x20] sm:$0xf]
    %v978 = vld [vmem:[%s9 + $0x24] sm:$0xf]
    %v979 = vld [vmem:[%s9 + $0x28] sm:$0xf]
    %v980 = vld [vmem:[%s9 + $0x2c] sm:$0xf]
    %v981 = vld [vmem:[%s9 + $0x30] sm:$0xf]
    %v982 = vld [vmem:[%s9 + $0x34] sm:$0xf]
    %v983 = vld [vmem:[%s9 + $0x38] sm:$0xf]
    %v984 = vld [vmem:[%s9 + $0x3c] sm:$0xf]
    %v985 = vld [vmem:[%s9 + $0x40] sm:$0xf]
    %v986 = vld [vmem:[%s9 + $0x44] sm:$0xf]
    %v987 = vld [vmem:[%s9 + $0x48] sm:$0xf]
    %v988 = vld [vmem:[%s9 + $0x4c] sm:$0xf]
    %v989 = vld [vmem:[%s9 + $0x50] sm:$0xf]
    %v990 = vld [vmem:[%s9 + $0x54] sm:$0xf]
    %v991 = vld [vmem:[%s9 + $0x58] sm:$0xf]
    %v992 = vld [vmem:[%s9 + $0x5c] sm:$0xf]
    %v993 = vld [vmem:[%s9 + $0x60] sm:$0xf]
    %v994 = vld [vmem:[%s9 + $0x64] sm:$0xf]
    %v995 = vld [vmem:[%s9 + $0x68] sm:$0xf]
    %v996 = vld [vmem:[%s9 + $0x6c] sm:$0xf]
    %v997 = vld [vmem:[%s9 + $0x70] sm:$0xf]
    %v998 = vld [vmem:[%s9 + $0x74] sm:$0xf]
    %v999 = vld [vmem:[%s9 + $0x78] sm:$0xf]
    %v1000 = vld [vmem:[%s9 + $0x7c] sm:$0xf]
    %v1001 = vld [vmem:[%s10] sm:$0x1]
    %v1003 = vperm.slane %v1001, 0
    %v1037 = vunpack.c.l.b16 %v969
    %v1038 = vunpack.c.l.b16 %v970
    %v1039 = vunpack.c.l.b16 %v971
    %v1040 = vunpack.c.l.b16 %v972
    %v1041 = vunpack.c.l.b16 %v973
    %v1042 = vunpack.c.l.b16 %v974
    %v1043 = vunpack.c.l.b16 %v975
    %v1044 = vunpack.c.l.b16 %v976
    %v1045 = vunpack.c.l.b16 %v977
    %v1046 = vunpack.c.l.b16 %v978
    %v1047 = vunpack.c.l.b16 %v979
    %v1048 = vunpack.c.l.b16 %v980
    %v1049 = vunpack.c.l.b16 %v981
    %v1050 = vunpack.c.l.b16 %v982
    %v1051 = vunpack.c.l.b16 %v983
    %v1052 = vunpack.c.l.b16 %v984
    %v1053 = vunpack.c.l.b16 %v985
    %v1054 = vunpack.c.l.b16 %v986
    %v1055 = vunpack.c.l.b16 %v987
    %v1056 = vunpack.c.l.b16 %v988
    %v1057 = vunpack.c.l.b16 %v989
    %v1058 = vunpack.c.l.b16 %v990
    %v1059 = vunpack.c.l.b16 %v991
    %v1060 = vunpack.c.l.b16 %v992
    %v1061 = vunpack.c.l.b16 %v993
    %v1062 = vunpack.c.l.b16 %v994
    %v1063 = vunpack.c.l.b16 %v995
    %v1064 = vunpack.c.l.b16 %v996
    %v1065 = vunpack.c.l.b16 %v997
    %v1066 = vunpack.c.l.b16 %v998
    %v1067 = vunpack.c.l.b16 %v999
    %v1068 = vunpack.c.l.b16 %v1000
    %v1069 = vpack.c.b16 %v1038, %v1037
    %v1070 = vpack.c.b16 %v1040, %v1039
    %v1071 = vpack.c.b16 %v1042, %v1041
    %v1072 = vpack.c.b16 %v1044, %v1043
    %v1073 = vpack.c.b16 %v1046, %v1045
    %v1074 = vpack.c.b16 %v1048, %v1047
    %v1075 = vpack.c.b16 %v1050, %v1049
    %v1076 = vpack.c.b16 %v1052, %v1051
    %v1077 = vpack.c.b16 %v1054, %v1053
    %v1078 = vpack.c.b16 %v1056, %v1055
    %v1079 = vpack.c.b16 %v1058, %v1057
    %v1080 = vpack.c.b16 %v1060, %v1059
    %v1081 = vpack.c.b16 %v1062, %v1061
    %v1082 = vpack.c.b16 %v1064, %v1063
    %v1083 = vpack.c.b16 %v1066, %v1065
    %v1084 = vpack.c.b16 %v1068, %v1067
    %1101 = vmatpush.bf16.msra.mxu0 %v1076
    %1102 = vmatpush.bf16.msra.mxu0 %v1075
    %1103 = vmatpush.bf16.msra.mxu0 %v1074
    %1104 = vmatpush.bf16.msra.mxu0 %v1073
    %1105 = vmatpush.bf16.msra.mxu0 %v1072
    %1106 = vmatpush.bf16.msra.mxu0 %v1071
    %1107 = vmatpush.bf16.msra.mxu0 %v1070
    %1108 = vmatpush.bf16.msra.mxu0 %v1069
    %1109 = vmatmul.bf16.gmra.mxu0 %v967
    %v1110 = vpop.f32.mrf.mxu0
    %v1111 = vadd.f32 %v1003, %v1110
    %v1112 = vpop.f32.mrf.mxu0
    %v1113 = vadd.f32 %v1003, %v1112
    %1114 = vdwg.mxu0
    %1115 = vmatpush.bf16.msra.mxu0 %v1084
    %1116 = vmatpush.bf16.msra.mxu0 %v1083
    %1117 = vmatpush.bf16.msra.mxu0 %v1082
    %1118 = vmatpush.bf16.msra.mxu0 %v1081
    %1119 = vmatpush.bf16.msra.mxu0 %v1080
    %1120 = vmatpush.bf16.msra.mxu0 %v1079
    %1121 = vmatpush.bf16.msra.mxu0 %v1078
    %1122 = vmatpush.bf16.msra.mxu0 %v1077
    %1123 = vmatmul.bf16.gmra.mxu0 %v968
    %v1124 = vpop.f32.mrf.mxu0
    %v1125 = vadd.f32 %v1111, %v1124
    %v1126 = vpop.f32.mrf.mxu0
    %v1127 = vadd.f32 %v1113, %v1126
    %1128 = vdwg.mxu0
    %v1129 = vtanh.pop %v1125
    %v1130 = vtanh.pop %v1127
    %vm1131 = vcmask 130048
    %1132 = vst.msk [vmem:[%s11] sm:$0xff] %vm1131, %v1129
    %1133 = vst.msk [vmem:[%s11 + $0x8] sm:$0xff] %vm1131, %v1130
    // Predicated region
    $region58: #{decoder_forward.1} parent=1 // pred_check
      _
    $region59: #{decoder_forward.1} parent=1 // pred_check_branch
      %1135 = sbr.rel (0) target = $region61
    $region60: #{decoder_forward.1} parent=1 // pred_region
      _
    $region61: #{decoder_forward.1} parent=1 // pred_fallthru
      _
    // Predicated region
    $region62: #{decoder_forward.1} parent=1 // pred_check
      _
    $region63: #{decoder_forward.1} parent=1 // pred_check_branch
      %1137 = sbr.rel (0) target = $region65
    $region64: #{decoder_forward.1} parent=1 // pred_region
      _
    $region65: #{decoder_forward.1} parent=1 // pred_fallthru
      _
    %1138 = vsyncpa [#allocation3], 1
    %1139 = vsyncpa [#allocation5], 1

</llo_original>
